<compile_context>
chip_gen: v7x
topology: tpu7x:2x2x1
jax: 0.10.0
libtpu: 0.0.40
codegen_flags: <defaults>
</compile_context>

<pallas_src>
import functools

import jax
import jax.numpy as jnp
from jax.experimental import pallas as pl
from jax.experimental.pallas import tpu as pltpu


def cvae_encoder_kernel(
    x_ref, cond_ref, epsT_ref,          # batch-tiled inputs (x f32, cond int32, eps^T f32)
    w1x_ref, w1y_ref, b1_ref,           # layer1 split: x-part / one-hot-part (bf16 W, f32 b)
    w23_ref, b23_ref,                   # fused layer2|layer3 head -> [mu | log-sigma]
    out_ref,                            # (L+1, TB) f32: rows 0..L-1 = z^T, row L = per-row KL
):
    L = epsT_ref.shape[0]
    C = w1y_ref.shape[0]

    # In-kernel bf16 cast of x (removes a wrapper-side HBM pass over x).
    x = x_ref[...].astype(jnp.bfloat16)            # (TB, D_in)
    cond = cond_ref[...]                           # (TB, 1) int32
    TB = x.shape[0]

    # F.one_hot(cond, n_conds) via iota compare, built directly as bf16 operand.
    iota = jax.lax.broadcasted_iota(jnp.int32, (TB, C), 1)
    onehot = (iota == cond).astype(jnp.float32).astype(jnp.bfloat16)   # (TB, C)

    # layer1 + ReLU: concat([x, one_hot]) @ W1 == x @ W1x + one_hot @ W1y
    h = (jnp.dot(x, w1x_ref[...], preferred_element_type=jnp.float32)
         + jnp.dot(onehot, w1y_ref[...], preferred_element_type=jnp.float32)
         + b1_ref[...])                                                # (TB, H) f32
    h = jnp.maximum(h, 0.0).astype(jnp.bfloat16)

    # Fused mu / log-sigma projection, then transpose once so all remaining
    # math and the stores are lane-dense (batch on the lane axis).
    t23 = jnp.dot(h, w23_ref[...], preferred_element_type=jnp.float32) + b23_ref[...]
    t23T = t23.T                                                       # (2L, TB) f32
    muT = t23T[:L]                                                     # layer2 output^T
    sigmaT = jnp.exp(t23T[L:])                                         # exp(layer3 output)^T

    # Reparameterized sample (eps already transposed, lane-dense).
    zT = muT + sigmaT * epsT_ref[...]                                  # (L, TB)

    # KL term per row (module-exact formula, incl. the 1e-8); sublane reduce.
    s2 = sigmaT * sigmaT
    klT = 0.5 * jnp.sum(s2 + muT * muT - jnp.log(s2 + 1e-8) - 1.0,
                        axis=0, keepdims=True)                         # (1, TB)

    out_ref[...] = jnp.concatenate([zT, klT], axis=0)                  # (L+1, TB)


def prepare_cvae_params(w1x, w1y, b1, w2, b2, w3, b3):
    """One-time parameter preparation (do NOT call per forward).

    Fuses the mu / log-sigma heads and casts weights to bf16 / biases to f32,
    so no cast passes run on the per-call path.
    Weights are in (in, out) layout (transposed nn.Linear).
    """
    w23 = jnp.concatenate([jnp.asarray(w2), jnp.asarray(w3)], axis=1)
    b23 = jnp.concatenate([jnp.asarray(b2).reshape(1, -1),
                           jnp.asarray(b3).reshape(1, -1)], axis=1)
    return (
        jnp.asarray(w1x, jnp.bfloat16),
        jnp.asarray(w1y, jnp.bfloat16),
        jnp.asarray(b1, jnp.float32).reshape(1, -1),
        w23.astype(jnp.bfloat16),
        b23.astype(jnp.float32),
    )


def cvae_encoder_forward(x, cond, eps, params, *, block_b=1024):
    """Encoder forward in a single batch-tiled Pallas kernel.

    params = prepare_cvae_params(...).  Returns (z[B, L], kl scalar).
    block_b: max batch rows per grid step.  Keep G = 1-2 on v5e/v6e (single
    TensorCore, every step is overhead); on v7x pass block_b <= B/2 so the
    "parallel" grid axis can shard across both TensorCores.
    """
    w1x, w1y, b1, w23, b23 = params
    B, D_in = x.shape
    L = eps.shape[-1]
    H = w1x.shape[1]
    C = w1y.shape[0]

    # Tile selection: single full-array block when it fits (no padding, no
    # alignment constraints); otherwise 128-multiple tiles (lane-dense output
    # blocks) with a ragged last block handled by Pallas clipping.
    if B <= block_b:
        TB, G = B, 1
    else:
        TB = max(128, (block_b // 128) * 128)
        G = pl.cdiv(B, TB)

    cond2 = cond.astype(jnp.int32).reshape(B, 1)
    epsT = jnp.asarray(eps, jnp.float32).T          # (L, B) lane-dense noise

    row = lambda i: (i, 0)      # batch on sublanes (x, cond)
    col = lambda i: (0, i)      # batch on lanes (eps^T, output slab)
    const = lambda i: (0, 0)    # weights: VMEM-resident across grid steps

    in_specs = [
        pl.BlockSpec((TB, D_in), row),
        pl.BlockSpec((TB, 1), row),
        pl.BlockSpec((L, TB), col),
        pl.BlockSpec((D_in, H), const),
        pl.BlockSpec((C, H), const),
        pl.BlockSpec((1, H), const),
        pl.BlockSpec((H, 2 * L), const),
        pl.BlockSpec((1, 2 * L), const),
    ]
    out_specs = pl.BlockSpec((L + 1, TB), col)
    out_shape = jax.ShapeDtypeStruct((L + 1, B), jnp.float32)

    cost = pl.CostEstimate(
        flops=2 * B * (D_in * H + C * H + H * 2 * L),
        transcendentals=2 * B * L,                       # exp + log per latent
        bytes_accessed=int(
            B * D_in * 4 + B * 4 + B * L * 4
            + (D_in * H + C * H + H * 2 * L) * 2
            + (H + 2 * L) * 4
            + (L + 1) * B * 4
        ),
    )

    out = pl.pallas_call(
        cvae_encoder_kernel,
        grid=(G,),
        in_specs=in_specs,
        out_specs=out_specs,
        out_shape=out_shape,
        compiler_params=pltpu.CompilerParams(
            dimension_semantics=("parallel",),
        ),
        cost_estimate=cost,
    )(x, cond2, epsT, w1x, w1y, b1, w23, b23)

    z = out[:L, :].T                 # (B, L)
    kl = jnp.mean(out[L, :])         # mean over the true batch (no pad columns exist)
    return z, kl


def reference_forward(x, cond, eps, params_f32):
    """Pure-JAX f32 reference mirroring the PyTorch module semantics."""
    w1x, w1y, b1, w2, b2, w3, b3 = params_f32
    onehot = jax.nn.one_hot(cond, w1y.shape[0], dtype=jnp.float32)
    h = jax.nn.relu(x @ w1x + onehot @ w1y + b1)
    mu = h @ w2 + b2
    sigma = jnp.exp(h @ w3 + b3)
    z = mu + sigma * eps
    kl = jnp.mean(0.5 * jnp.sum(
        sigma ** 2 + mu ** 2 - jnp.log(sigma ** 2 + 1e-8) - 1.0, axis=1))
    return z, kl


if __name__ == "__main__":
    # Small shapes consistent with the module (MNIST-style encoder, shrunk).
    B, D_in, H, L, C = 8, 256, 128, 2, 10   # batch, input_dim, hid_dim, latent_dim, n_conds

    key = jax.random.PRNGKey(0)
    ks = jax.random.split(key, 12)

    def init(k, shape, scale=0.05):
        return jax.random.normal(k, shape, dtype=jnp.float32) * scale

    # Parameters, stored as (in, out) = transposed nn.Linear weights.
    w1x = init(ks[0], (D_in, H))
    w1y = init(ks[1], (C, H))
    b1 = init(ks[2], (1, H))
    w2 = init(ks[3], (H, L))
    b2 = init(ks[4], (1, L))
    w3 = init(ks[5], (H, L))
    b3 = init(ks[6], (1, L))

    # One-time parameter prep (casts + head fusion hoisted out of the call path).
    kernel_params = prepare_cvae_params(w1x, w1y, b1, w2, b2, w3, b3)
    ref_params = (w1x, w1y, b1, w2, b2, w3, b3)

    # Inputs (eps = deterministic reparameterization noise).
    # TODO(synk): torch.distributions.Normal.sample is external RNG; it is
    # provided as the `eps` input for reproducibility.
    x = jax.random.uniform(ks[7], (B, D_in), dtype=jnp.float32)
    cond = jax.random.randint(ks[8], (B,), 0, C, dtype=jnp.int32)
    eps = jax.random.normal(ks[9], (B, L), dtype=jnp.float32)

    fwd = jax.jit(cvae_encoder_forward, static_argnames=("block_b",))

    z, kl = fwd(x, cond, eps, kernel_params)
    jax.block_until_ready((z, kl))

    z_ref, kl_ref = reference_forward(x, cond, eps, ref_params)
    assert z.shape == (B, L)
    assert jnp.allclose(z, z_ref, atol=5e-2, rtol=5e-2), float(jnp.max(jnp.abs(z - z_ref)))
    assert jnp.allclose(kl, kl_ref, atol=5e-2, rtol=5e-2), (float(kl), float(kl_ref))

    # Exercise the multi-step grid + ragged-last-block path (B not a multiple of TB).
    B2 = 200
    x2 = jax.random.uniform(ks[10], (B2, D_in), dtype=jnp.float32)
    cond2 = jax.random.randint(ks[11], (B2,), 0, C, dtype=jnp.int32)
    eps2 = jax.random.normal(jax.random.fold_in(key, 99), (B2, L), dtype=jnp.float32)

    z2, kl2 = fwd(x2, cond2, eps2, kernel_params, block_b=128)   # TB=128, G=2 (ragged tail)
    jax.block_until_ready((z2, kl2))

    z2_ref, kl2_ref = reference_forward(x2, cond2, eps2, ref_params)
    assert jnp.allclose(z2, z2_ref, atol=5e-2, rtol=5e-2), float(jnp.max(jnp.abs(z2 - z2_ref)))
    assert jnp.allclose(kl2, kl2_ref, atol=5e-2, rtol=5e-2), (float(kl2), float(kl2_ref))

    print("KERNEL_OK")
</pallas_src>

<mosaic_0001>
module attributes {stable_mosaic.version = 11 : i64} {
  func.func @cvae_encoder_kernel(%arg0: i32, %arg1: memref<8x256xf32, #tpu.memory_space<vmem>>, %arg2: memref<8x1xi32, #tpu.memory_space<vmem>>, %arg3: memref<2x8xf32, #tpu.memory_space<vmem>>, %arg4: memref<256x128xbf16, #tpu.memory_space<vmem>>, %arg5: memref<10x128xbf16, #tpu.memory_space<vmem>>, %arg6: memref<1x128xf32, #tpu.memory_space<vmem>>, %arg7: memref<128x4xbf16, #tpu.memory_space<vmem>>, %arg8: memref<1x4xf32, #tpu.memory_space<vmem>>, %arg9: memref<3x8xf32, #tpu.memory_space<vmem>>) attributes {dimension_semantics = [#tpu.dimension_semantics<parallel>], iteration_bounds = array<i64: 1>, scalar_prefetch = 0 : i64, scratch_operands = 0 : i64, tpu.core_type = #tpu.core_type<tc>, window_params = [{transform_indices = @transform_0, window_bounds = array<i64: 8, 256>}, {transform_indices = @transform_1, window_bounds = array<i64: 8, 1>}, {transform_indices = @transform_2, window_bounds = array<i64: 2, 8>}, {pipeline_mode = #tpu.pipeline_mode<synchronous>, transform_indices = @transform_3, window_bounds = array<i64: 256, 128>}, {pipeline_mode = #tpu.pipeline_mode<synchronous>, transform_indices = @transform_4, window_bounds = array<i64: 10, 128>}, {pipeline_mode = #tpu.pipeline_mode<synchronous>, transform_indices = @transform_5, window_bounds = array<i64: 1, 128>}, {pipeline_mode = #tpu.pipeline_mode<synchronous>, transform_indices = @transform_6, window_bounds = array<i64: 128, 4>}, {pipeline_mode = #tpu.pipeline_mode<synchronous>, transform_indices = @transform_7, window_bounds = array<i64: 1, 4>}, {transform_indices = @transform_8, window_bounds = array<i64: 3, 8>}]} {
    %c0 = arith.constant 0 : index
    %c0_0 = arith.constant 0 : index
    %0 = vector.load %arg1[%c0, %c0_0] : memref<8x256xf32, #tpu.memory_space<vmem>>, vector<8x256xf32>
    %1 = arith.truncf %0 : vector<8x256xf32> to vector<8x256xbf16>
    %c0_1 = arith.constant 0 : index
    %c0_2 = arith.constant 0 : index
    %2 = vector.load %arg2[%c0_1, %c0_2] : memref<8x1xi32, #tpu.memory_space<vmem>>, vector<8x1xi32>
    %3 = tpu.iota {dimensions = array<i32: 1>} : vector<8x10xi32>
    %4 = vector.broadcast %2 : vector<8x1xi32> to vector<8x10xi32>
    %5 = arith.cmpi eq, %3, %4 : vector<8x10xi32>
    %6 = arith.extui %5 : vector<8x10xi1> to vector<8x10xi32>
    %7 = arith.sitofp %6 : vector<8x10xi32> to vector<8x10xf32>
    %8 = arith.truncf %7 : vector<8x10xf32> to vector<8x10xbf16>
    %c0_3 = arith.constant 0 : index
    %c0_4 = arith.constant 0 : index
    %9 = vector.load %arg4[%c0_3, %c0_4] : memref<256x128xbf16, #tpu.memory_space<vmem>>, vector<256x128xbf16>
    %cst = arith.constant dense<0.000000e+00> : vector<8x128xf32>
    %10 = tpu.matmul %1, %9, %cst {dimension_numbers = #tpu.dot_dimension_numbers<[1], [0], [0], [1], [0, 0, 1, 1], [], []>} : vector<8x256xbf16>, vector<256x128xbf16>, vector<8x128xf32> -> vector<8x128xf32>
    %c0_5 = arith.constant 0 : index
    %c0_6 = arith.constant 0 : index
    %11 = vector.load %arg5[%c0_5, %c0_6] : memref<10x128xbf16, #tpu.memory_space<vmem>>, vector<10x128xbf16>
    %cst_7 = arith.constant dense<0.000000e+00> : vector<8x128xf32>
    %12 = tpu.matmul %8, %11, %cst_7 {dimension_numbers = #tpu.dot_dimension_numbers<[1], [0], [0], [1], [0, 0, 1, 1], [], []>} : vector<8x10xbf16>, vector<10x128xbf16>, vector<8x128xf32> -> vector<8x128xf32>
    %13 = arith.addf %10, %12 : vector<8x128xf32>
    %c0_8 = arith.constant 0 : index
    %c0_9 = arith.constant 0 : index
    %14 = vector.load %arg6[%c0_8, %c0_9] : memref<1x128xf32, #tpu.memory_space<vmem>>, vector<1x128xf32>
    %15 = vector.broadcast %14 : vector<1x128xf32> to vector<8x128xf32>
    %16 = arith.addf %13, %15 : vector<8x128xf32>
    %cst_10 = arith.constant 0.000000e+00 : f32
    %17 = vector.broadcast %cst_10 : f32 to vector<8x128xf32>
    %18 = arith.maximumf %16, %17 : vector<8x128xf32>
    %19 = arith.truncf %18 : vector<8x128xf32> to vector<8x128xbf16>
    %c0_11 = arith.constant 0 : index
    %c0_12 = arith.constant 0 : index
    %20 = vector.load %arg7[%c0_11, %c0_12] : memref<128x4xbf16, #tpu.memory_space<vmem>>, vector<128x4xbf16>
    %cst_13 = arith.constant dense<0.000000e+00> : vector<8x4xf32>
    %21 = tpu.matmul %19, %20, %cst_13 {dimension_numbers = #tpu.dot_dimension_numbers<[1], [0], [0], [1], [0, 0, 1, 1], [], []>} : vector<8x128xbf16>, vector<128x4xbf16>, vector<8x4xf32> -> vector<8x4xf32>
    %c0_14 = arith.constant 0 : index
    %c0_15 = arith.constant 0 : index
    %22 = vector.load %arg8[%c0_14, %c0_15] : memref<1x4xf32, #tpu.memory_space<vmem>>, vector<1x4xf32>
    %23 = vector.broadcast %22 : vector<1x4xf32> to vector<8x4xf32>
    %24 = arith.addf %21, %23 : vector<8x4xf32>
    %25 = tpu.transpose %24, [1, 0] : vector<8x4xf32> -> vector<4x8xf32>
    %26 = vector.extract_strided_slice %25 {offsets = [0, 0], sizes = [2, 8], strides = [1, 1]} : vector<4x8xf32> to vector<2x8xf32>
    %27 = vector.extract_strided_slice %25 {offsets = [2, 0], sizes = [2, 8], strides = [1, 1]} : vector<4x8xf32> to vector<2x8xf32>
    %28 = math.exp %27 : vector<2x8xf32>
    %c0_16 = arith.constant 0 : index
    %c0_17 = arith.constant 0 : index
    %29 = vector.load %arg3[%c0_16, %c0_17] : memref<2x8xf32, #tpu.memory_space<vmem>>, vector<2x8xf32>
    %30 = arith.mulf %28, %29 : vector<2x8xf32>
    %31 = arith.addf %26, %30 : vector<2x8xf32>
    %32 = arith.mulf %28, %28 : vector<2x8xf32>
    %33 = arith.mulf %26, %26 : vector<2x8xf32>
    %34 = arith.addf %32, %33 : vector<2x8xf32>
    %cst_18 = arith.constant 9.99999993E-9 : f32
    %35 = vector.broadcast %cst_18 : f32 to vector<2x8xf32>
    %36 = arith.addf %32, %35 : vector<2x8xf32>
    %37 = math.log %36 : vector<2x8xf32>
    %38 = arith.subf %34, %37 : vector<2x8xf32>
    %cst_19 = arith.constant 1.000000e+00 : f32
    %39 = vector.broadcast %cst_19 : f32 to vector<2x8xf32>
    %40 = arith.subf %38, %39 : vector<2x8xf32>
    %cst_20 = arith.constant dense<0.000000e+00> : vector<8xf32>
    %41 = vector.multi_reduction <add>, %40, %cst_20 [0] : vector<2x8xf32> to vector<8xf32>
    %42 = vector.shape_cast %41 : vector<8xf32> to vector<1x8xf32>
    %cst_21 = arith.constant 5.000000e-01 : f32
    %43 = vector.broadcast %cst_21 : f32 to vector<1x8xf32>
    %44 = arith.mulf %43, %42 : vector<1x8xf32>
    %45 = tpu.concatenate %31, %44 in 0 : vector<2x8xf32>, vector<1x8xf32> -> vector<3x8xf32>
    %c0_22 = arith.constant 0 : index
    %c0_23 = arith.constant 0 : index
    %46 = vector.load %arg9[%c0_22, %c0_23] : memref<3x8xf32, #tpu.memory_space<vmem>>, vector<3x8xf32>
    tpu.vector_store %arg9[%c0_22, %c0_23], %45 {strides = array<i32>} : memref<3x8xf32, #tpu.memory_space<vmem>>, vector<3x8xf32>,
    return
  }
  func.func @transform_0(%arg0: i32) -> (i32, i32) {
    %c0_i32 = arith.constant 0 : i32
    %c0_i32_0 = arith.constant 0 : i32
    return %arg0, %c0_i32 : i32, i32
  }
  func.func @transform_1(%arg0: i32) -> (i32, i32) {
    %c0_i32 = arith.constant 0 : i32
    %c0_i32_0 = arith.constant 0 : i32
    return %arg0, %c0_i32 : i32, i32
  }
  func.func @transform_2(%arg0: i32) -> (i32, i32) {
    %c0_i32 = arith.constant 0 : i32
    %c0_i32_0 = arith.constant 0 : i32
    return %c0_i32, %arg0 : i32, i32
  }
  func.func @transform_3(%arg0: i32) -> (i32, i32) {
    %c0_i32 = arith.constant 0 : i32
    %c0_i32_0 = arith.constant 0 : i32
    %c0_i32_1 = arith.constant 0 : i32
    return %c0_i32, %c0_i32_0 : i32, i32
  }
  func.func @transform_4(%arg0: i32) -> (i32, i32) {
    %c0_i32 = arith.constant 0 : i32
    %c0_i32_0 = arith.constant 0 : i32
    %c0_i32_1 = arith.constant 0 : i32
    return %c0_i32, %c0_i32_0 : i32, i32
  }
  func.func @transform_5(%arg0: i32) -> (i32, i32) {
    %c0_i32 = arith.constant 0 : i32
    %c0_i32_0 = arith.constant 0 : i32
    %c0_i32_1 = arith.constant 0 : i32
    return %c0_i32, %c0_i32_0 : i32, i32
  }
  func.func @transform_6(%arg0: i32) -> (i32, i32) {
    %c0_i32 = arith.constant 0 : i32
    %c0_i32_0 = arith.constant 0 : i32
    %c0_i32_1 = arith.constant 0 : i32
    return %c0_i32, %c0_i32_0 : i32, i32
  }
  func.func @transform_7(%arg0: i32) -> (i32, i32) {
    %c0_i32 = arith.constant 0 : i32
    %c0_i32_0 = arith.constant 0 : i32
    %c0_i32_1 = arith.constant 0 : i32
    return %c0_i32, %c0_i32_0 : i32, i32
  }
  func.func @transform_8(%arg0: i32) -> (i32, i32) {
    %c0_i32 = arith.constant 0 : i32
    %c0_i32_0 = arith.constant 0 : i32
    return %c0_i32, %arg0 : i32, i32
  }
}

</mosaic_0001>

<llo_original>
// kernel: cvae_encoder_forward.1
$region0: #{cvae_encoder_forward.1}
  #allocation0 [shape = 'u32[]', space=smem, size = 0x4, offset = 0x4, fixed_abs, tag = 'smem constant byte address 0x4 - core index']
  #allocation1 [shape = 'u32[144,128]{1,0:T(1,128)}', space=vmem, size = 0x12000, scoped, tag = 'internal scratch']
  %s0 = inlined_call_operand.vmem [shape: f32[8,256], index: 0, kind: input, shape index: {}]
  %s1 = inlined_call_operand.vmem [shape: s32[8,1], index: 1, kind: input, shape index: {}]
  %s2 = inlined_call_operand.vmem [shape: f32[2,8], index: 2, kind: input, shape index: {}]
  %s3 = inlined_call_operand.hbm [shape: bf16[256,128], index: 3, kind: input, shape index: {}]
  %s4 = inlined_call_operand.vmem [shape: bf16[10,128], index: 4, kind: input, shape index: {}]
  %s5 = inlined_call_operand.vmem [shape: f32[1,128], index: 5, kind: input, shape index: {}]
  %s6 = inlined_call_operand.vmem [shape: bf16[128,4], index: 6, kind: input, shape index: {}]
  %s7 = inlined_call_operand.vmem [shape: f32[1,4], index: 7, kind: input, shape index: {}]
  %s8 = inlined_call_operand.vmem [shape: f32[3,8], index: 8, kind: output, shape index: {}]
  %s9 = sld [smem:[#allocation0]]
  $region46: #{cvae_encoder_forward.1} parent=0
    _
  %s11 = ssub.s32 1, %s9
  %s12 = scalar_select 0, %s11, %s9
  $region1: #{cvae_encoder_forward.1} parent=0
    #allocation2 [shape = 'u8[65536]{0}', space=vmem, size = 0x10000, scoped, tag = 'input window, operand 3, single buffered']
    #allocation3 [shape = 's32[1]{0}', space=sflag, size = 0x4, scoped, tag = 'scoped memory for cvae_encoder_forward.1']
    %13 = vsyncpa [#allocation3], 0
    // Predicated region
    $region2: #{cvae_encoder_forward.1} parent=1 // pred_check
      _
    $region3: #{cvae_encoder_forward.1} parent=1 // pred_check_branch
      %15 = sbr.rel (0) target = $region5
    $region4: #{cvae_encoder_forward.1} parent=1 // pred_region
      _
    $region5: #{cvae_encoder_forward.1} parent=1 // pred_fallthru
      _
    // Predicated region
    $region6: #{cvae_encoder_forward.1} parent=1 // pred_check
      _
    $region7: #{cvae_encoder_forward.1} parent=1 // pred_check_branch
      %17 = sbr.rel (0) target = $region9
    $region8: #{cvae_encoder_forward.1} parent=1 // pred_region
      _
    $region9: #{cvae_encoder_forward.1} parent=1 // pred_fallthru
      _
    // Predicated region
    $region10: #{cvae_encoder_forward.1} parent=1 // pred_check
      _
    $region11: #{cvae_encoder_forward.1} parent=1 // pred_check_branch
      %19 = sbr.rel (0) target = $region13
    $region12: #{cvae_encoder_forward.1} parent=1 // pred_region
      _
    $region13: #{cvae_encoder_forward.1} parent=1 // pred_fallthru
      _
    // Predicated region
    $region14: #{cvae_encoder_forward.1} parent=1 // pred_check
      _
    $region15: #{cvae_encoder_forward.1} parent=1 // pred_check_branch
      %21 = sbr.rel (0) target = $region17
    $region16: #{cvae_encoder_forward.1} parent=1 // pred_region
      %s23 = ssub.s32 2048, 2048
      %24 = vsyncadd [#allocation3], %s23
      %s25 = sshll.u32 [#allocation2], 4
      %s26 = int_to_ptr.vmem [resolvable:$true] %s25
      %31 = dma.hbm_to_vmem [thread:$0]  %s3, 2048, %s26, [#allocation3], 64, 64, 4
    $region17: #{cvae_encoder_forward.1} parent=1 // pred_fallthru
      _
    // Predicated region
    $region18: #{cvae_encoder_forward.1} parent=1 // pred_check
      _
    $region19: #{cvae_encoder_forward.1} parent=1 // pred_check_branch
      %33 = sbr.rel (0) target = $region21
    $region20: #{cvae_encoder_forward.1} parent=1 // pred_region
      _
    $region21: #{cvae_encoder_forward.1} parent=1 // pred_fallthru
      _
    // Predicated region
    $region22: #{cvae_encoder_forward.1} parent=1 // pred_check
      _
    $region23: #{cvae_encoder_forward.1} parent=1 // pred_check_branch
      %35 = sbr.rel (0) target = $region25
    $region24: #{cvae_encoder_forward.1} parent=1 // pred_region
      _
    $region25: #{cvae_encoder_forward.1} parent=1 // pred_fallthru
      _
    // Predicated region
    $region26: #{cvae_encoder_forward.1} parent=1 // pred_check
      _
    $region27: #{cvae_encoder_forward.1} parent=1 // pred_check_branch
      %37 = sbr.rel (0) target = $region29
    $region28: #{cvae_encoder_forward.1} parent=1 // pred_region
      _
    $region29: #{cvae_encoder_forward.1} parent=1 // pred_fallthru
      _
    // Predicated region
    $region30: #{cvae_encoder_forward.1} parent=1 // pred_check
      _
    $region31: #{cvae_encoder_forward.1} parent=1 // pred_check_branch
      %39 = sbr.rel (0) target = $region33
    $region32: #{cvae_encoder_forward.1} parent=1 // pred_region
      _
    $region33: #{cvae_encoder_forward.1} parent=1 // pred_fallthru
      _
    // Predicated region
    $region34: #{cvae_encoder_forward.1} parent=1 // pred_check
      _
    $region35: #{cvae_encoder_forward.1} parent=1 // pred_check_branch
      %41 = sbr.rel (0) target = $region37
    $region36: #{cvae_encoder_forward.1} parent=1 // pred_region
      %42 = dma.done [#allocation3], 2048
    $region37: #{cvae_encoder_forward.1} parent=1 // pred_fallthru
      _
    %v44 = vld [vmem:[%s0] sm:$0xff]
    %v45 = vld [vmem:[%s0 + $0x8] sm:$0xff]
    %v46 = vpack.c.bf16 %v44, %v44
    %v47 = vpack.c.bf16 %v45, %v45
    %v48 = vld [vmem:[%s1] sm:$0xff]
    %v49 = vlaneseq
    %v50 = vand.u32 %v49, 127
    %51 = vset.pattern.permute.xlu0 0
    %52 = vperm.xlu0 %51, %v48
    %v53 = vpop.permute.xlu0 %52
    %vm54 = vcmp.eq.s32.totalorder %v50, %v53
    %v55 = vsel %vm54, 1, 0
    %v56 = vcvt.s32.f32 %v55
    %v57 = vpack.c.bf16 %v56, %v56
    %v58 = vld [vmem:[#allocation2] sm:$0xf]
    %v59 = vld [vmem:[#allocation2 + $0x4] sm:$0xf]
    %v60 = vld [vmem:[#allocation2 + $0x8] sm:$0xf]
    %v61 = vld [vmem:[#allocation2 + $0xc] sm:$0xf]
    %v62 = vld [vmem:[#allocation2 + $0x10] sm:$0xf]
    %v63 = vld [vmem:[#allocation2 + $0x14] sm:$0xf]
    %v64 = vld [vmem:[#allocation2 + $0x18] sm:$0xf]
    %v65 = vld [vmem:[#allocation2 + $0x1c] sm:$0xf]
    %v66 = vld [vmem:[#allocation2 + $0x20] sm:$0xf]
    %v67 = vld [vmem:[#allocation2 + $0x24] sm:$0xf]
    %v68 = vld [vmem:[#allocation2 + $0x28] sm:$0xf]
    %v69 = vld [vmem:[#allocation2 + $0x2c] sm:$0xf]
    %v70 = vld [vmem:[#allocation2 + $0x30] sm:$0xf]
    %v71 = vld [vmem:[#allocation2 + $0x34] sm:$0xf]
    %v72 = vld [vmem:[#allocation2 + $0x38] sm:$0xf]
    %v73 = vld [vmem:[#allocation2 + $0x3c] sm:$0xf]
    %v74 = vld [vmem:[#allocation2 + $0x40] sm:$0xf]
    %v75 = vld [vmem:[#allocation2 + $0x44] sm:$0xf]
    %v76 = vld [vmem:[#allocation2 + $0x48] sm:$0xf]
    %v77 = vld [vmem:[#allocation2 + $0x4c] sm:$0xf]
    %v78 = vld [vmem:[#allocation2 + $0x50] sm:$0xf]
    %v79 = vld [vmem:[#allocation2 + $0x54] sm:$0xf]
    %v80 = vld [vmem:[#allocation2 + $0x58] sm:$0xf]
    %v81 = vld [vmem:[#allocation2 + $0x5c] sm:$0xf]
    %v82 = vld [vmem:[#allocation2 + $0x60] sm:$0xf]
    %v83 = vld [vmem:[#allocation2 + $0x64] sm:$0xf]
    %v84 = vld [vmem:[#allocation2 + $0x68] sm:$0xf]
    %v85 = vld [vmem:[#allocation2 + $0x6c] sm:$0xf]
    %v86 = vld [vmem:[#allocation2 + $0x70] sm:$0xf]
    %v87 = vld [vmem:[#allocation2 + $0x74] sm:$0xf]
    %v88 = vld [vmem:[#allocation2 + $0x78] sm:$0xf]
    %v89 = vld [vmem:[#allocation2 + $0x7c] sm:$0xf]
    %v90 = vld [vmem:[%s4] sm:$0xf]
    %v91 = vld [vmem:[%s4 + $0x4] sm:$0x1]
    %v94 = vunpack.c.l.b16 %v90
    %v95 = vunpack.c.l.b16 %v91
    %v96 = vpack.c.b16 %v95, %v94
    %vm97 = vcmask 80896
    %v99 = vsel %vm97, %v57, 0
    %vm101 = vcmask 1044480
    %v103 = vsel %vm101, %v96, 0
    %105 = vmatprep.subr.bf16.mxu0 0
    %106 = vmatpush1.bf16.msra.mxu0 %v103
    %107 = vmatprep.subr.bf16.mxu0 0
    %108 = vmatpush1.bf16.msra.mxu0 0
    %109 = vmatprep.subr.bf16.mxu0 0
    %110 = vmatpush1.bf16.msra.mxu0 0
    %111 = vmatprep.subr.bf16.mxu0 0
    %112 = vmatpush1.bf16.msra.mxu0 0
    %113 = vmatprep.subr.bf16.mxu0 0
    %114 = vmatpush1.bf16.msra.mxu0 0
    %115 = vmatprep.subr.bf16.mxu0 0
    %116 = vmatpush1.bf16.msra.mxu0 0
    %117 = vmatprep.subr.bf16.mxu0 0
    %118 = vmatpush1.bf16.msra.mxu0 0
    %119 = vmatprep.subr.bf16.mxu0 0
    %120 = vmatpush1.bf16.msra.mxu0 0
    %121 = vmatprep.subr.bf16.mxu0 0
    %122 = vmatpush1.bf16.msra.mxu0 0
    %123 = vmatprep.subr.bf16.mxu0 0
    %124 = vmatpush1.bf16.msra.mxu0 0
    %125 = vmatprep.subr.bf16.mxu0 0
    %126 = vmatpush1.bf16.msra.mxu0 0
    %127 = vmatprep.subr.bf16.mxu0 0
    %128 = vmatpush1.bf16.msra.mxu0 0
    %129 = vmatprep.subr.bf16.mxu0 0
    %130 = vmatpush1.bf16.msra.mxu0 0
    %131 = vmatprep.subr.bf16.mxu0 0
    %132 = vmatpush1.bf16.msra.mxu0 0
    %133 = vmatprep.subr.bf16.mxu0 0
    %134 = vmatpush1.bf16.msra.mxu0 0
    %135 = vmatprep.subr.bf16.mxu0 0
    %136 = vmatpush1.bf16.msra.mxu0 0
    %137 = vmatprep.mubr.bf16.mxu0 0
    %138 = vmatmul.mubr.bf16.gmra.mrb[0].mxu0 %v99
    %v139 = vpop.f32.mrb[0].mxu0
    %v140 = vadd.f32 0.0, %v139
    %v141 = vpop.f32.mrb[0].mxu0
    %v142 = vpop.f32.mrb[0].mxu0
    %v143 = vpop.f32.mrb[0].mxu0
    %144 = vdwg.mxu0
    %v177 = vunpack.c.l.b16 %v58
    %v178 = vunpack.c.l.b16 %v59
    %v179 = vunpack.c.l.b16 %v60
    %v180 = vunpack.c.l.b16 %v61
    %v181 = vunpack.c.l.b16 %v62
    %v182 = vunpack.c.l.b16 %v63
    %v183 = vunpack.c.l.b16 %v64
    %v184 = vunpack.c.l.b16 %v65
    %v185 = vunpack.c.l.b16 %v66
    %v186 = vunpack.c.l.b16 %v67
    %v187 = vunpack.c.l.b16 %v68
    %v188 = vunpack.c.l.b16 %v69
    %v189 = vunpack.c.l.b16 %v70
    %v190 = vunpack.c.l.b16 %v71
    %v191 = vunpack.c.l.b16 %v72
    %v192 = vunpack.c.l.b16 %v73
    %v193 = vunpack.c.l.b16 %v74
    %v194 = vunpack.c.l.b16 %v75
    %v195 = vunpack.c.l.b16 %v76
    %v196 = vunpack.c.l.b16 %v77
    %v197 = vunpack.c.l.b16 %v78
    %v198 = vunpack.c.l.b16 %v79
    %v199 = vunpack.c.l.b16 %v80
    %v200 = vunpack.c.l.b16 %v81
    %v201 = vunpack.c.l.b16 %v82
    %v202 = vunpack.c.l.b16 %v83
    %v203 = vunpack.c.l.b16 %v84
    %v204 = vunpack.c.l.b16 %v85
    %v205 = vunpack.c.l.b16 %v86
    %v206 = vunpack.c.l.b16 %v87
    %v207 = vunpack.c.l.b16 %v88
    %v208 = vunpack.c.l.b16 %v89
    %v209 = vpack.c.b16 %v178, %v177
    %v210 = vpack.c.b16 %v180, %v179
    %v211 = vpack.c.b16 %v182, %v181
    %v212 = vpack.c.b16 %v184, %v183
    %v213 = vpack.c.b16 %v186, %v185
    %v214 = vpack.c.b16 %v188, %v187
    %v215 = vpack.c.b16 %v190, %v189
    %v216 = vpack.c.b16 %v192, %v191
    %v217 = vpack.c.b16 %v194, %v193
    %v218 = vpack.c.b16 %v196, %v195
    %v219 = vpack.c.b16 %v198, %v197
    %v220 = vpack.c.b16 %v200, %v199
    %v221 = vpack.c.b16 %v202, %v201
    %v222 = vpack.c.b16 %v204, %v203
    %v223 = vpack.c.b16 %v206, %v205
    %v224 = vpack.c.b16 %v208, %v207
    %241 = vmatprep.subr.bf16.mxu0 0
    %242 = vmatpush1.bf16.msra.mxu0 %v209
    %243 = vmatprep.subr.bf16.mxu0 0
    %244 = vmatpush1.bf16.msra.mxu0 %v210
    %245 = vmatprep.subr.bf16.mxu0 0
    %246 = vmatpush1.bf16.msra.mxu0 %v211
    %247 = vmatprep.subr.bf16.mxu0 0
    %248 = vmatpush1.bf16.msra.mxu0 %v212
    %249 = vmatprep.subr.bf16.mxu0 0
    %250 = vmatpush1.bf16.msra.mxu0 %v213
    %251 = vmatprep.subr.bf16.mxu0 0
    %252 = vmatpush1.bf16.msra.mxu0 %v214
    %253 = vmatprep.subr.bf16.mxu0 0
    %254 = vmatpush1.bf16.msra.mxu0 %v215
    %255 = vmatprep.subr.bf16.mxu0 0
    %256 = vmatpush1.bf16.msra.mxu0 %v216
    %257 = vmatprep.subr.bf16.mxu0 0
    %258 = vmatpush1.bf16.msra.mxu0 %v217
    %259 = vmatprep.subr.bf16.mxu0 0
    %260 = vmatpush1.bf16.msra.mxu0 %v218
    %261 = vmatprep.subr.bf16.mxu0 0
    %262 = vmatpush1.bf16.msra.mxu0 %v219
    %263 = vmatprep.subr.bf16.mxu0 0
    %264 = vmatpush1.bf16.msra.mxu0 %v220
    %265 = vmatprep.subr.bf16.mxu0 0
    %266 = vmatpush1.bf16.msra.mxu0 %v221
    %267 = vmatprep.subr.bf16.mxu0 0
    %268 = vmatpush1.bf16.msra.mxu0 %v222
    %269 = vmatprep.subr.bf16.mxu0 0
    %270 = vmatpush1.bf16.msra.mxu0 %v223
    %271 = vmatprep.subr.bf16.mxu0 0
    %272 = vmatpush1.bf16.msra.mxu0 %v224
    %273 = vmatprep.mubr.bf16.mxu0 %v47
    %274 = vmatmul.mubr.bf16.gmra.mrb[0].mxu0 %v46
    %v275 = vpop.f32.mrb[0].mxu0
    %v276 = vadd.f32 %v140, %v275
    %v277 = vpop.f32.mrb[0].mxu0
    %v278 = vpop.f32.mrb[0].mxu0
    %v279 = vpop.f32.mrb[0].mxu0
    %280 = vdwg.mxu0
    %v281 = vld [vmem:[%s5] sm:$0x1]
    %v283 = vlaneseq
    %v284 = vshrl.u32 %v283, 7
    %v285 = vsub.s32 0, %v284
    %v286 = vrot.slane %v281, %v285
    %v288 = vadd.f32 %v276, %v286
    %v289 = vmax.f32 %v288, 0.0
    %v290 = vpack.c.bf16 %v289, %v289
    %v291 = vld [vmem:[%s6] sm:$0xf]
    %v292 = vld [vmem:[%s6 + $0x4] sm:$0xf]
    %v293 = vld [vmem:[%s6 + $0x8] sm:$0xf]
    %v294 = vld [vmem:[%s6 + $0xc] sm:$0xf]
    %v295 = vld [vmem:[%s6 + $0x10] sm:$0xf]
    %v296 = vld [vmem:[%s6 + $0x14] sm:$0xf]
    %v297 = vld [vmem:[%s6 + $0x18] sm:$0xf]
    %v298 = vld [vmem:[%s6 + $0x1c] sm:$0xf]
    %v299 = vld [vmem:[%s6 + $0x20] sm:$0xf]
    %v300 = vld [vmem:[%s6 + $0x24] sm:$0xf]
    %v301 = vld [vmem:[%s6 + $0x28] sm:$0xf]
    %v302 = vld [vmem:[%s6 + $0x2c] sm:$0xf]
    %v303 = vld [vmem:[%s6 + $0x30] sm:$0xf]
    %v304 = vld [vmem:[%s6 + $0x34] sm:$0xf]
    %v305 = vld [vmem:[%s6 + $0x38] sm:$0xf]
    %v306 = vld [vmem:[%s6 + $0x3c] sm:$0xf]
    %v307 = vld [vmem:[%s7] sm:$0x1]
    %v309 = vlaneseq
    %v310 = vshrl.u32 %v309, 7
    %v311 = vsub.s32 0, %v310
    %v312 = vrot.slane %v307, %v311
    %v330 = vunpack.c.l.b16 %v291
    %v331 = vunpack.c.l.b16 %v292
    %v332 = vunpack.c.l.b16 %v293
    %v333 = vunpack.c.l.b16 %v294
    %v334 = vunpack.c.l.b16 %v295
    %v335 = vunpack.c.l.b16 %v296
    %v336 = vunpack.c.l.b16 %v297
    %v337 = vunpack.c.l.b16 %v298
    %v338 = vunpack.c.l.b16 %v299
    %v339 = vunpack.c.l.b16 %v300
    %v340 = vunpack.c.l.b16 %v301
    %v341 = vunpack.c.l.b16 %v302
    %v342 = vunpack.c.l.b16 %v303
    %v343 = vunpack.c.l.b16 %v304
    %v344 = vunpack.c.l.b16 %v305
    %v345 = vunpack.c.l.b16 %v306
    %v346 = vpack.c.b16 %v331, %v330
    %v347 = vpack.c.b16 %v333, %v332
    %v348 = vpack.c.b16 %v335, %v334
    %v349 = vpack.c.b16 %v337, %v336
    %v350 = vpack.c.b16 %v339, %v338
    %v351 = vpack.c.b16 %v341, %v340
    %v352 = vpack.c.b16 %v343, %v342
    %v353 = vpack.c.b16 %v345, %v344
    %362 = vmatprep.subr.bf16.mxu0 0
    %363 = vmatpush1.bf16.msra.mxu0 %v346
    %364 = vmatprep.subr.bf16.mxu0 0
    %365 = vmatpush1.bf16.msra.mxu0 %v347
    %366 = vmatprep.subr.bf16.mxu0 0
    %367 = vmatpush1.bf16.msra.mxu0 %v348
    %368 = vmatprep.subr.bf16.mxu0 0
    %369 = vmatpush1.bf16.msra.mxu0 %v349
    %370 = vmatprep.subr.bf16.mxu0 0
    %371 = vmatpush1.bf16.msra.mxu0 %v350
    %372 = vmatprep.subr.bf16.mxu0 0
    %373 = vmatpush1.bf16.msra.mxu0 %v351
    %374 = vmatprep.subr.bf16.mxu0 0
    %375 = vmatpush1.bf16.msra.mxu0 %v352
    %376 = vmatprep.subr.bf16.mxu0 0
    %377 = vmatpush1.bf16.msra.mxu0 %v353
    %378 = vmatprep.subr.bf16.mxu0 0
    %379 = vmatpush1.bf16.msra.mxu0 0
    %380 = vmatprep.subr.bf16.mxu0 0
    %381 = vmatpush1.bf16.msra.mxu0 0
    %382 = vmatprep.subr.bf16.mxu0 0
    %383 = vmatpush1.bf16.msra.mxu0 0
    %384 = vmatprep.subr.bf16.mxu0 0
    %385 = vmatpush1.bf16.msra.mxu0 0
    %386 = vmatprep.subr.bf16.mxu0 0
    %387 = vmatpush1.bf16.msra.mxu0 0
    %388 = vmatprep.subr.bf16.mxu0 0
    %389 = vmatpush1.bf16.msra.mxu0 0
    %390 = vmatprep.subr.bf16.mxu0 0
    %391 = vmatpush1.bf16.msra.mxu0 0
    %392 = vmatprep.subr.bf16.mxu0 0
    %393 = vmatpush1.bf16.msra.mxu0 0
    %394 = vmatprep.mubr.bf16.mxu0 0
    %395 = vmatmul.mubr.bf16.gmra.mrb[0].mxu0 %v290
    %v396 = vpop.f32.mrb[0].mxu0
    %v397 = vadd.f32 %v312, %v396
    %v398 = vpop.f32.mrb[0].mxu0
    %v399 = vpop.f32.mrb[0].mxu0
    %v400 = vpop.f32.mrb[0].mxu0
    %401 = vdwg.mxu0
    %402 = vxpose.xlu0.b32.start [1/16] %v397, 128
    %403 = vxpose.xlu0.b32.cont [2/16] 0.0, 128
    %404 = vxpose.xlu0.b32.cont [3/16] 0.0, 128
    %405 = vxpose.xlu0.b32.cont [4/16] 0.0, 128
    %406 = vxpose.xlu0.b32.cont [5/16] 0.0, 128
    %407 = vxpose.xlu0.b32.cont [6/16] 0.0, 128
    %408 = vxpose.xlu0.b32.cont [7/16] 0.0, 128
    %409 = vxpose.xlu0.b32.cont [8/16] 0.0, 128
    %410 = vxpose.xlu0.b32.cont [9/16] 0.0, 128
    %411 = vxpose.xlu0.b32.cont [10/16] 0.0, 128
    %412 = vxpose.xlu0.b32.cont [11/16] 0.0, 128
    %413 = vxpose.xlu0.b32.cont [12/16] 0.0, 128
    %414 = vxpose.xlu0.b32.cont [13/16] 0.0, 128
    %415 = vxpose.xlu0.b32.cont [14/16] 0.0, 128
    %416 = vxpose.xlu0.b32.cont [15/16] 0.0, 128
    %417 = vxpose.xlu0.b32.end [16/16] 0.0, 128
    %v418 = vpop.trf.xlu0
    %v419 = vpop.trf.xlu0
    %v420 = vpop.trf.xlu0
    %v421 = vpop.trf.xlu0
    %v422 = vpop.trf.xlu0
    %v423 = vpop.trf.xlu0
    %v424 = vpop.trf.xlu0
    %v425 = vpop.trf.xlu0
    %v426 = vpop.trf.xlu0
    %v427 = vpop.trf.xlu0
    %v428 = vpop.trf.xlu0
    %v429 = vpop.trf.xlu0
    %v430 = vpop.trf.xlu0
    %v431 = vpop.trf.xlu0
    %v432 = vpop.trf.xlu0
    %v433 = vpop.trf.xlu0
    %v434 = vmul.f32 %v418, 1.442695
    %v435 = vpow.pop %v434
    %v436 = vld [vmem:[%s2] sm:$0x3]
    %v438 = vrot.slane %v436, 6
    %v440 = vmul.f32 %v435, %v438
    %v442 = vrot.slane %v440, 2
    %v444 = vadd.f32 %v418, %v442
    %v445 = vmul.f32 %v435, %v435
    %v446 = vmul.f32 %v418, %v418
    %v448 = vrot.slane %v446, 6
    %v450 = vadd.f32 %v445, %v448
    %v451 = vadd.f32 %v445, 1e-08
    %v452 = vlog2.pop %v451
    %v453 = vmul.f32 %v452, 0.6931472
    %v454 = vsub.f32 %v450, %v453
    %v455 = vsub.f32 %v454, 1.0
    %v457 = vrot.slane %v455, 2
    %vm459 = vcmask 58368
    %v460 = vsel %vm459, %v457, 0.0
    %v461 = vrot.slane %v460, 4
    %v462 = vadd.f32 %v460, %v461
    %v463 = vrot.slane %v462, 2
    %v464 = vadd.f32 %v462, %v463
    %v465 = vrot.slane %v464, 1
    %v466 = vadd.f32 %v464, %v465
    %v467 = vmul.f32 %v466, 0.5
    %vm468 = vcmask 1041408
    %v469 = vsel %vm468, %v444, %v467
    %vm470 = vcmask 59392
    %471 = vst.msk [vmem:[%s8] sm:$0x7] %vm470, %v469
    // Predicated region
    $region38: #{cvae_encoder_forward.1} parent=1 // pred_check
      _
    $region39: #{cvae_encoder_forward.1} parent=1 // pred_check_branch
      %473 = sbr.rel (0) target = $region41
    $region40: #{cvae_encoder_forward.1} parent=1 // pred_region
      _
    $region41: #{cvae_encoder_forward.1} parent=1 // pred_fallthru
      _
    // Predicated region
    $region42: #{cvae_encoder_forward.1} parent=1 // pred_check
      _
    $region43: #{cvae_encoder_forward.1} parent=1 // pred_check_branch
      %475 = sbr.rel (0) target = $region45
    $region44: #{cvae_encoder_forward.1} parent=1 // pred_region
      _
    $region45: #{cvae_encoder_forward.1} parent=1 // pred_fallthru
      _
    %476 = vsyncpa [#allocation3], 1

</llo_original>
